<compile_context>
chip_gen: v7x
topology: tpu7x:2x2x1
jax: 0.10.0
libtpu: 0.0.40
codegen_flags: <defaults>
</compile_context>

<pallas_src>
import functools

import jax
import jax.numpy as jnp
from jax import lax
from jax.experimental import pallas as pl
from jax.experimental.pallas import tpu as pltpu

NUM_CLASSES = 5


def _newton_recip(x):
    # EUP approximate reciprocal + one Newton step -> near-f32 accuracy while
    # keeping the divide off the VPU critical path.
    r = pl.reciprocal(x, approx=True)
    return r * (2.0 - x * r)


def _linear_softmax(x, w, b):
    # x: (TB, D) f32, w: (C, D) f32 (PyTorch layout, no host transpose), b: (1, C)
    logits = lax.dot_general(
        x, w,
        dimension_numbers=(((1,), (1,)), ((), ())),   # contract D with D
        preferred_element_type=jnp.float32,
    ) + b
    m = jnp.max(logits, axis=1, keepdims=True)
    e = jnp.exp(logits - m)
    return e * _newton_recip(jnp.sum(e, axis=1, keepdims=True))


def predict_kernel(x_ref, w_ref, b_ref, out_ref):
    out_ref[...] = _linear_softmax(
        x_ref[...], w_ref[...], b_ref[...]
    ).astype(out_ref.dtype)


def loss_kernel(x_ref, w_ref, b_ref, y_ref, loss_ref, acc_ref, *, batch, block_b):
    i = pl.program_id(0)

    @pl.when(i == 0)
    def _():
        acc_ref[...] = jnp.zeros_like(acc_ref)

    p = _linear_softmax(x_ref[...], w_ref[...], b_ref[...])          # (TB, C)

    # second log_softmax — cross_entropy semantics applied to the probabilities
    # (intentional replication of the PyTorch module's behavior)
    m = jnp.max(p, axis=1, keepdims=True)
    lse = m + jnp.log(jnp.sum(jnp.exp(p - m), axis=1, keepdims=True))
    logp = p - lse                                                   # (TB, C)

    TB, C = p.shape
    class_ids = lax.broadcasted_iota(jnp.int32, (TB, C), 1)
    one_hot = (class_ids == y_ref[...]).astype(jnp.float32)          # y: (TB, 1)
    picked = jnp.sum(logp * one_hot, axis=1, keepdims=True)          # (TB, 1)

    # mask rows of a ragged last tile (global row index >= batch)
    row = i * block_b + lax.broadcasted_iota(jnp.int32, (TB, 1), 0)
    picked = jnp.where(row < batch, picked, 0.0)

    acc_ref[...] += jnp.sum(picked, keepdims=True)                   # (1, 1)

    @pl.when(i == pl.num_programs(0) - 1)
    def _():
        loss_ref[...] = acc_ref[...] * (-1.0 / batch)


def torch_model_forward(x, weight, bias, y=None, *, block_b=None):
    """x: (B, D) f32, weight: (C, D) f32, bias: (C,) f32, y: (B,) int or None."""
    B, D = x.shape
    C = NUM_CLASSES
    assert weight.shape == (C, D)

    # Batch tile: <=512 rows keeps 2x double-buffered x blocks tiny even under
    # v7x's smaller scoped VMEM; round to a sublane multiple when tiling.
    if block_b is None:
        block_b = min(512, B)
    if block_b < B:
        block_b = max(8, (block_b // 8) * 8)
    else:
        block_b = B
    grid = (pl.cdiv(B, block_b),)

    x = x.astype(jnp.float32)
    w = weight.astype(jnp.float32)                  # (C, D) — no transpose
    b2 = bias.reshape(1, C).astype(jnp.float32)

    x_spec = pl.BlockSpec((block_b, D), lambda i: (i, 0))
    w_spec = pl.BlockSpec((C, D), lambda i: (0, 0))   # resident (constant map)
    b_spec = pl.BlockSpec((1, C), lambda i: (0, 0))   # resident (constant map)

    if y is None:
        return pl.pallas_call(
            predict_kernel,
            out_shape=jax.ShapeDtypeStruct((B, C), jnp.float32),
            grid=grid,
            in_specs=[x_spec, w_spec, b_spec],
            out_specs=pl.BlockSpec((block_b, C), lambda i: (i, 0)),
            compiler_params=pltpu.CompilerParams(
                dimension_semantics=("parallel",)),
        )(x, w, b2)

    y2 = y.astype(jnp.int32).reshape(B, 1)
    kern = functools.partial(loss_kernel, batch=B, block_b=block_b)
    # (1,1) VMEM output kept (instead of SMEM scalar) to avoid vector->scalar
    # extract lowering; the whole grid writes it back to HBM exactly once.
    loss = pl.pallas_call(
        kern,
        out_shape=jax.ShapeDtypeStruct((1, 1), jnp.float32),
        grid=grid,
        in_specs=[x_spec, w_spec, b_spec,
                  pl.BlockSpec((block_b, 1), lambda i: (i, 0))],
        out_specs=pl.BlockSpec((1, 1), lambda i: (0, 0)),
        scratch_shapes=[pltpu.VMEM((1, 1), jnp.float32)],
        compiler_params=pltpu.CompilerParams(
            dimension_semantics=("arbitrary",)),
    )(x, w, b2, y2)
    return loss[0, 0]


def _reference(x, weight, bias, y=None):
    # pure-JAX reference of the exact torch semantics
    logits = x @ weight.T + bias
    p = jax.nn.softmax(logits, axis=1)
    if y is None:
        return p
    logp = jax.nn.log_softmax(p, axis=1)
    return -jnp.mean(logp[jnp.arange(x.shape[0]), y])


if __name__ == "__main__":
    B, D, C = 20, 32, NUM_CLASSES   # B=20 with block_b=8 -> 3 tiles, ragged tail
    key = jax.random.PRNGKey(0)
    kx, kw, kb, ky = jax.random.split(key, 4)

    x = jax.random.normal(kx, (B, D), dtype=jnp.float32)
    bound = 1.0 / (D ** 0.5)
    weight = jax.random.uniform(kw, (C, D), minval=-bound, maxval=bound,
                                dtype=jnp.float32)
    bias = jax.random.uniform(kb, (C,), minval=-bound, maxval=bound,
                              dtype=jnp.float32)
    y = jax.random.randint(ky, (B,), 0, C, dtype=jnp.int32)

    # prediction path (no labels) — exercises the tiled, parallel grid
    y_pred = jax.block_until_ready(torch_model_forward(x, weight, bias,
                                                       block_b=8))
    # loss path (with labels) — exercises the accumulated reduction + masking
    loss = jax.block_until_ready(torch_model_forward(x, weight, bias, y,
                                                     block_b=8))

    ref_pred = _reference(x, weight, bias)
    ref_loss = _reference(x, weight, bias, y)
    assert jnp.allclose(y_pred, ref_pred, atol=2e-5, rtol=1e-4), \
        float(jnp.max(jnp.abs(y_pred - ref_pred)))
    assert jnp.allclose(loss, ref_loss, atol=2e-5, rtol=1e-4), \
        float(jnp.abs(loss - ref_loss))

    print("KERNEL_OK")
</pallas_src>

<mosaic_0001>
module attributes {stable_mosaic.version = 11 : i64} {
  func.func @predict_kernel(%arg0: i32, %arg1: memref<8x32xf32, #tpu.memory_space<vmem>>, %arg2: memref<5x32xf32, #tpu.memory_space<vmem>>, %arg3: memref<1x5xf32, #tpu.memory_space<vmem>>, %arg4: memref<8x5xf32, #tpu.memory_space<vmem>>) attributes {dimension_semantics = [#tpu.dimension_semantics<parallel>], iteration_bounds = array<i64: 3>, scalar_prefetch = 0 : i64, scratch_operands = 0 : i64, tpu.core_type = #tpu.core_type<tc>, window_params = [{transform_indices = @transform_0, window_bounds = array<i64: 8, 32>}, {pipeline_mode = #tpu.pipeline_mode<synchronous>, transform_indices = @transform_1, window_bounds = array<i64: 5, 32>}, {pipeline_mode = #tpu.pipeline_mode<synchronous>, transform_indices = @transform_2, window_bounds = array<i64: 1, 5>}, {transform_indices = @transform_3, window_bounds = array<i64: 8, 5>}]} {
    %c0 = arith.constant 0 : index
    %c0_0 = arith.constant 0 : index
    %0 = vector.load %arg1[%c0, %c0_0] : memref<8x32xf32, #tpu.memory_space<vmem>>, vector<8x32xf32>
    %c0_1 = arith.constant 0 : index
    %c0_2 = arith.constant 0 : index
    %1 = vector.load %arg2[%c0_1, %c0_2] : memref<5x32xf32, #tpu.memory_space<vmem>>, vector<5x32xf32>
    %c0_3 = arith.constant 0 : index
    %c0_4 = arith.constant 0 : index
    %2 = vector.load %arg3[%c0_3, %c0_4] : memref<1x5xf32, #tpu.memory_space<vmem>>, vector<1x5xf32>
    %cst = arith.constant dense<0.000000e+00> : vector<8x5xf32>
    %3 = tpu.matmul %0, %1, %cst {dimension_numbers = #tpu.dot_dimension_numbers<[1], [1], [0], [0], [0, 0, 1, 0], [], []>} : vector<8x32xf32>, vector<5x32xf32>, vector<8x5xf32> -> vector<8x5xf32>
    %4 = vector.broadcast %2 : vector<1x5xf32> to vector<8x5xf32>
    %5 = arith.addf %3, %4 : vector<8x5xf32>
    %cst_5 = arith.constant dense<0xFF800000> : vector<8xf32>
    %6 = vector.multi_reduction <maximumf>, %5, %cst_5 [1] : vector<8x5xf32> to vector<8xf32>
    %7 = vector.shape_cast %6 : vector<8xf32> to vector<8x1xf32>
    %8 = vector.broadcast %7 : vector<8x1xf32> to vector<8x5xf32>
    %9 = arith.subf %5, %8 : vector<8x5xf32>
    %10 = math.exp %9 : vector<8x5xf32>
    %cst_6 = arith.constant dense<0.000000e+00> : vector<8xf32>
    %11 = vector.multi_reduction <add>, %10, %cst_6 [1] : vector<8x5xf32> to vector<8xf32>
    %12 = vector.shape_cast %11 : vector<8xf32> to vector<8x1xf32>
    %13 = tpu.reciprocal %12 {approx = true} : vector<8x1xf32> -> vector<8x1xf32>
    %14 = arith.mulf %12, %13 : vector<8x1xf32>
    %cst_7 = arith.constant 2.000000e+00 : f32
    %15 = vector.broadcast %cst_7 : f32 to vector<8x1xf32>
    %16 = arith.subf %15, %14 : vector<8x1xf32>
    %17 = arith.mulf %13, %16 : vector<8x1xf32>
    %18 = vector.broadcast %17 : vector<8x1xf32> to vector<8x5xf32>
    %19 = arith.mulf %10, %18 : vector<8x5xf32>
    %c0_8 = arith.constant 0 : index
    %c0_9 = arith.constant 0 : index
    %20 = vector.load %arg4[%c0_8, %c0_9] : memref<8x5xf32, #tpu.memory_space<vmem>>, vector<8x5xf32>
    tpu.vector_store %arg4[%c0_8, %c0_9], %19 {strides = array<i32>} : memref<8x5xf32, #tpu.memory_space<vmem>>, vector<8x5xf32>,
    return
  }
  func.func @transform_0(%arg0: i32) -> (i32, i32) {
    %c0_i32 = arith.constant 0 : i32
    %c0_i32_0 = arith.constant 0 : i32
    return %arg0, %c0_i32 : i32, i32
  }
  func.func @transform_1(%arg0: i32) -> (i32, i32) {
    %c0_i32 = arith.constant 0 : i32
    %c0_i32_0 = arith.constant 0 : i32
    %c0_i32_1 = arith.constant 0 : i32
    return %c0_i32, %c0_i32_0 : i32, i32
  }
  func.func @transform_2(%arg0: i32) -> (i32, i32) {
    %c0_i32 = arith.constant 0 : i32
    %c0_i32_0 = arith.constant 0 : i32
    %c0_i32_1 = arith.constant 0 : i32
    return %c0_i32, %c0_i32_0 : i32, i32
  }
  func.func @transform_3(%arg0: i32) -> (i32, i32) {
    %c0_i32 = arith.constant 0 : i32
    %c0_i32_0 = arith.constant 0 : i32
    return %arg0, %c0_i32 : i32, i32
  }
}

</mosaic_0001>

<llo_original>
// kernel: tpu_custom_call.1
$region0: #{tpu_custom_call.1}
  #allocation0 [shape = 'u32[]', space=smem, size = 0x4, offset = 0x4, fixed_abs, tag = 'smem constant byte address 0x4 - core index']
  #allocation1 [shape = 'u32[144,128]{1,0:T(1,128)}', space=vmem, size = 0x12000, scoped, tag = 'internal scratch']
  %s0 = inlined_call_operand.hbm [shape: f32[20,32], index: 0, kind: input, shape index: {}]
  %s1 = inlined_call_operand.hbm [shape: f32[5,32], index: 1, kind: input, shape index: {}]
  %s2 = inlined_call_operand.vmem [shape: f32[1,5], index: 2, kind: input, shape index: {}]
  %s3 = inlined_call_operand.vmem [shape: f32[20,5], index: 3, kind: output, shape index: {}]
  %s4 = sld [smem:[#allocation0]]
  $region53: #{tpu_custom_call.1} parent=0
    _
  %s6 = ssub.s32 1, %s4
  %s7 = scalar_select 0, %s6, %s4
  $region1: #{tpu_custom_call.1} parent=0
    #allocation2 [shape = 'u8[8192]{0}', space=vmem, size = 0x2000, scoped, tag = 'input window, operand 0']
    #allocation3 [shape = 's32[2]{0}', space=sflag, size = 0x8, scoped, tag = 'scoped memory for tpu_custom_call.1']
    #allocation4 [shape = 'u8[4096]{0}', space=vmem, size = 0x1000, scoped, tag = 'input window, operand 1, single buffered']
    #allocation5 [shape = 's32[1]{0}', space=sflag, size = 0x4, scoped, tag = 'scoped memory for tpu_custom_call.1']
    %8 = vsyncpa [#allocation3], 0
    %s9 = scalar_lea.sflag [#allocation3], 1
    %10 = vsyncpa %s9, 0
    %11 = vsyncpa [#allocation5], 0
    loop: start=0, step=1, limit=5
    $region2: #{tpu_custom_call.1} parent=1 // loop_pre_header
      _
    $region3: #{tpu_custom_call.1} parent=1 // loop_header
      %s13 = sphi 0, %s17
      %p14 = scmp.ge.s32.totalorder %s13, 5
      %s23 = sphi 0, %s25
      %s26 = sphi 0, %s23
      %s27 = sphi 0, %s26
      %s43 = sphi 0, %s27
      %s47 = sphi 0, %s47
      %s49 = sphi 0, %s47
      %s50 = sphi 0, %s49
      %s64 = sphi 0, %s50
      %s68 = sphi 0, %s68
      %s70 = sphi 0, %s68
      %s71 = sphi 0, %s70
      %s85 = sphi 0, %s71
      %s91 = sphi 0, %s93
      %s94 = sphi 0, %s91
      %s95 = sphi 0, %s94
      %s111 = sphi 0, %s95
    $region4: #{tpu_custom_call.1} parent=1 // loop_header_branch
      %16 = sbr.rel (%p14) target = $region8
    $region5: #{tpu_custom_call.1} parent=1 // loop_body
      %s18 = ssub.s32 %s13, 1
      %s19 = ssub.s32 %s13, 2
      %s20 = sadd.s32 %s13, 1
      %s21 = ssub.s32 %s13, %s20
      %p22 = scmp.eq.s32.totalorder %s21, 0
      %s24 = sadd.s32 %s23, 1
      %s25 = scalar_select %p22, %s23, %s24
      %p28 = pneg %p22
      %p29 = scmp.eq.s32.totalorder %s13, 2
      %p30 = por %p28, %p29
      %p31 = scmp.ne.s32.totalorder %s23, %s26
      %p32 = scmp.eq.s32.totalorder %s13, 0
      %p33 = por %p31, %p32
      %p34 = scmp.ne.s32.totalorder %s23, %s26
      %p35 = scmp.eq.s32.totalorder %s18, 2
      %p36 = por %p34, %p35
      %p37 = scmp.ne.s32.totalorder %s26, %s27
      %p38 = scmp.eq.s32.totalorder %s18, 0
      %p39 = por %p37, %p38
      %p40 = scmp.ne.s32.totalorder %s26, %s27
      %p41 = scmp.eq.s32.totalorder %s19, 2
      %p42 = por %p40, %p41
      %p44 = scmp.ne.s32.totalorder %s27, %s43
      %p45 = scmp.eq.s32.totalorder %s19, 0
      %p46 = por %p44, %p45
      %s48 = sadd.s32 %s47, 1
      %p51 = scmp.eq.s32.totalorder %s13, 2
      %p52 = scmp.ne.s32.totalorder %s47, %s49
      %p53 = scmp.eq.s32.totalorder %s13, 0
      %p54 = por %p52, %p53
      %p55 = scmp.ne.s32.totalorder %s47, %s49
      %p56 = scmp.eq.s32.totalorder %s18, 2
      %p57 = por %p55, %p56
      %p58 = scmp.ne.s32.totalorder %s49, %s50
      %p59 = scmp.eq.s32.totalorder %s18, 0
      %p60 = por %p58, %p59
      %p61 = scmp.ne.s32.totalorder %s49, %s50
      %p62 = scmp.eq.s32.totalorder %s19, 2
      %p63 = por %p61, %p62
      %p65 = scmp.ne.s32.totalorder %s50, %s64
      %p66 = scmp.eq.s32.totalorder %s19, 0
      %p67 = por %p65, %p66
      %s69 = sadd.s32 %s68, 1
      %p72 = scmp.eq.s32.totalorder %s13, 2
      %p73 = scmp.ne.s32.totalorder %s68, %s70
      %p74 = scmp.eq.s32.totalorder %s13, 0
      %p75 = por %p73, %p74
      %p76 = scmp.ne.s32.totalorder %s68, %s70
      %p77 = scmp.eq.s32.totalorder %s18, 2
      %p78 = por %p76, %p77
      %p79 = scmp.ne.s32.totalorder %s70, %s71
      %p80 = scmp.eq.s32.totalorder %s18, 0
      %p81 = por %p79, %p80
      %p82 = scmp.ne.s32.totalorder %s70, %s71
      %p83 = scmp.eq.s32.totalorder %s19, 2
      %p84 = por %p82, %p83
      %p86 = scmp.ne.s32.totalorder %s71, %s85
      %p87 = scmp.eq.s32.totalorder %s19, 0
      %p88 = por %p86, %p87
      %s89 = ssub.s32 %s13, %s20
      %p90 = scmp.eq.s32.totalorder %s89, 0
      %s92 = sadd.s32 %s91, 1
      %s93 = scalar_select %p90, %s91, %s92
      %p96 = pneg %p90
      %p97 = scmp.eq.s32.totalorder %s13, 2
      %p98 = por %p96, %p97
      %p99 = scmp.ne.s32.totalorder %s91, %s94
      %p100 = scmp.eq.s32.totalorder %s13, 0
      %p101 = por %p99, %p100
      %p102 = scmp.ne.s32.totalorder %s91, %s94
      %p103 = scmp.eq.s32.totalorder %s18, 2
      %p104 = por %p102, %p103
      %p105 = scmp.ne.s32.totalorder %s94, %s95
      %p106 = scmp.eq.s32.totalorder %s18, 0
      %p107 = por %p105, %p106
      %p108 = scmp.ne.s32.totalorder %s94, %s95
      %p109 = scmp.eq.s32.totalorder %s19, 2
      %p110 = por %p108, %p109
      %p112 = scmp.ne.s32.totalorder %s95, %s111
      %p113 = scmp.eq.s32.totalorder %s19, 0
      %p114 = por %p112, %p113
      %p115 = scmp.le.s32.totalorder 1, %s13
      %p116 = scmp.lt.s32.totalorder %s13, 4
      %p117 = pnand %p115, %p116
      %p118 = pneg %p117
      // Predicated region
      $region9: #{tpu_custom_call.1} parent=5 // pred_check
        _
      $region10: #{tpu_custom_call.1} parent=5 // pred_check_branch
        %120 = sbr.rel (%p117) target = $region12
      $region11: #{tpu_custom_call.1} parent=5 // pred_region
        %s121 = ssub.s32 %s13, 1
        // Predicated region
        $region13: #{tpu_custom_call.1} parent=11 // pred_check
          %p122 = pneg %p60
        $region14: #{tpu_custom_call.1} parent=11 // pred_check_branch
          %124 = sbr.rel (%p122) target = $region16
        $region15: #{tpu_custom_call.1} parent=11 // pred_region
          %s126 = ssub.s32 128, 128
          %127 = vsyncadd [#allocation5], %s126
          %s129 = sshll.u32 [#allocation4], 4
          %s130 = int_to_ptr.vmem [resolvable:$true] %s129
          %132 = dma.hbm_to_vmem [thread:$0]  %s1, 128, %s130, [#allocation5]
        $region16: #{tpu_custom_call.1} parent=11 // pred_fallthru
          _
        // Predicated region
        $region17: #{tpu_custom_call.1} parent=11 // pred_check
          %p133 = pneg %p81
        $region18: #{tpu_custom_call.1} parent=11 // pred_check_branch
          %135 = sbr.rel (%p133) target = $region20
        $region19: #{tpu_custom_call.1} parent=11 // pred_region
          _
        $region20: #{tpu_custom_call.1} parent=11 // pred_fallthru
          _
      $region12: #{tpu_custom_call.1} parent=5 // pred_fallthru
        _
      %p136 = scmp.lt.s32.totalorder %s13, 3
      // Predicated region
      $region21: #{tpu_custom_call.1} parent=5 // pred_check
        %p137 = pneg %p136
      $region22: #{tpu_custom_call.1} parent=5 // pred_check_branch
        %139 = sbr.rel (%p137) target = $region24
      $region23: #{tpu_custom_call.1} parent=5 // pred_region
        // Predicated region
        $region25: #{tpu_custom_call.1} parent=23 // pred_check
          %p140 = pneg %p33
        $region26: #{tpu_custom_call.1} parent=23 // pred_check_branch
          %142 = sbr.rel (%p140) target = $region28
        $region27: #{tpu_custom_call.1} parent=23 // pred_region
          %s143 = sand.u32 %s23, 1
          %s144 = scalar_lea.sflag [#allocation3], %s143
          %s145 = sand.u32 %s23, 1
          %s146 = smul.addr %s145, 8
          %s147 = scalar_lea.vmem [#allocation2], %s146
          %s149 = ssub.s32 128, 128
          %150 = vsyncadd %s144, %s149
          %s151 = smul.addr %s13, 128
          %s152 = scalar_lea.hbm %s0, %s151
          %s154 = sshll.u32 %s147, 4
          %s155 = int_to_ptr.vmem [resolvable:$true] %s154
          %157 = dma.hbm_to_vmem [thread:$0]  %s152, 128, %s155, %s144
        $region28: #{tpu_custom_call.1} parent=23 // pred_fallthru
          _
      $region24: #{tpu_custom_call.1} parent=5 // pred_fallthru
        _
      %p158 = scmp.le.s32.totalorder 1, %s13
      %p159 = scmp.lt.s32.totalorder %s13, 4
      %p160 = pnand %p158, %p159
      %p161 = pneg %p160
      // Predicated region
      $region29: #{tpu_custom_call.1} parent=5 // pred_check
        _
      $region30: #{tpu_custom_call.1} parent=5 // pred_check_branch
        %163 = sbr.rel (%p160) target = $region32
      $region31: #{tpu_custom_call.1} parent=5 // pred_region
        %s164 = ssub.s32 %s13, 1
        %s165 = sand.u32 %s26, 1
        %s166 = scalar_lea.sflag [#allocation3], %s165
        %s167 = sand.u32 %s26, 1
        %s168 = smul.addr %s167, 8
        %s169 = scalar_lea.vmem [#allocation2], %s168
        // Predicated region
        $region33: #{tpu_custom_call.1} parent=31 // pred_check
          %p170 = pneg %p39
        $region34: #{tpu_custom_call.1} parent=31 // pred_check_branch
          %172 = sbr.rel (%p170) target = $region36
        $region35: #{tpu_custom_call.1} parent=31 // pred_region
          %173 = dma.done %s166, 128
        $region36: #{tpu_custom_call.1} parent=31 // pred_fallthru
          _
        // Predicated region
        $region37: #{tpu_custom_call.1} parent=31 // pred_check
          %p174 = pneg %p60
        $region38: #{tpu_custom_call.1} parent=31 // pred_check_branch
          %176 = sbr.rel (%p174) target = $region40
        $region39: #{tpu_custom_call.1} parent=31 // pred_region
          %177 = dma.done [#allocation5], 128
        $region40: #{tpu_custom_call.1} parent=31 // pred_fallthru
          _
        %s178 = sand.u32 %s26, 1
        %s179 = scalar_lea.sflag [#allocation3], %s178
        %s180 = sand.u32 %s26, 1
        %s181 = smul.addr %s180, 8
        %s182 = scalar_lea.vmem [#allocation2], %s181
        %p183 = pneg %p39
        %p184 = pneg %p36
        %p185 = pneg %p60
        %p186 = pneg %p57
        %p187 = pneg %p81
        %p188 = pneg %p78
        %p189 = pneg %p107
        %p190 = pneg %p104
        %p191 = scmp.lt.s32.totalorder %s18, 2
        %s192 = scalar_select %p191, %s18, 2
        %s193 = smul.addr %s192, 8
        %s194 = scalar_lea.vmem %s3, %s193
        %p195 = scmp.lt.s32.totalorder %s18, 2
        %s196 = scalar_select %p195, %s18, 2
        %s197 = smul.addr %s196, 8
        %s198 = scalar_lea.vmem %s3, %s197
        %v199 = vld [vmem:[%s169] sm:$0xff]
        %v200 = vld [vmem:[#allocation4] sm:$0x1f]
        %v201 = vld [vmem:[%s2] sm:$0x1]
        %v203 = vlaneseq
        %v204 = vshrl.u32 %v203, 7
        %v205 = vsub.s32 0, %v204
        %v206 = vrot.slane %v201, %v205
        %vm208 = vcmask 261120
        %v210 = vsel %vm208, %v199, 0
        %v213 = vsel %vm208, %v200, 0
        %215 = vmatprep.subr.mxu0 0.0
        %216 = vmatpush1.xpose.msra.mxu0 %v213
        %217 = vmatprep.subr.mxu0 0.0
        %218 = vmatpush1.xpose.msra.mxu0 0.0
        %219 = vmatprep.subr.mxu0 0.0
        %220 = vmatpush1.xpose.msra.mxu0 0.0
        %221 = vmatprep.subr.mxu0 0.0
        %222 = vmatpush1.xpose.msra.mxu0 0.0
        %223 = vmatprep.subr.mxu0 0.0
        %224 = vmatpush1.xpose.msra.mxu0 0.0
        %225 = vmatprep.subr.mxu0 0.0
        %226 = vmatpush1.xpose.msra.mxu0 0.0
        %227 = vmatprep.subr.mxu0 0.0
        %228 = vmatpush1.xpose.msra.mxu0 0.0
        %229 = vmatprep.subr.mxu0 0.0
        %230 = vmatpush1.xpose.msra.mxu0 0.0
        %231 = vmatprep.subr.mxu0 0.0
        %232 = vmatpush1.xpose.msra.mxu0 0.0
        %233 = vmatprep.subr.mxu0 0.0
        %234 = vmatpush1.xpose.msra.mxu0 0.0
        %235 = vmatprep.subr.mxu0 0.0
        %236 = vmatpush1.xpose.msra.mxu0 0.0
        %237 = vmatprep.subr.mxu0 0.0
        %238 = vmatpush1.xpose.msra.mxu0 0.0
        %239 = vmatprep.subr.mxu0 0.0
        %240 = vmatpush1.xpose.msra.mxu0 0.0
        %241 = vmatprep.subr.mxu0 0.0
        %242 = vmatpush1.xpose.msra.mxu0 0.0
        %243 = vmatprep.subr.mxu0 0.0
        %244 = vmatpush1.xpose.msra.mxu0 0.0
        %245 = vmatprep.subr.mxu0 0.0
        %246 = vmatpush1.xpose.msra.mxu0 0.0
        %247 = vmatprep.subr.mxu0 0.0
        %248 = vmatpush1.xpose.msra.mxu0 0.0
        %249 = vmatprep.subr.mxu0 0.0
        %250 = vmatpush1.xpose.msra.mxu0 0.0
        %251 = vmatprep.subr.mxu0 0.0
        %252 = vmatpush1.xpose.msra.mxu0 0.0
        %253 = vmatprep.subr.mxu0 0.0
        %254 = vmatpush1.xpose.msra.mxu0 0.0
        %255 = vmatprep.subr.mxu0 0.0
        %256 = vmatpush1.xpose.msra.mxu0 0.0
        %257 = vmatprep.subr.mxu0 0.0
        %258 = vmatpush1.xpose.msra.mxu0 0.0
        %259 = vmatprep.subr.mxu0 0.0
        %260 = vmatpush1.xpose.msra.mxu0 0.0
        %261 = vmatprep.subr.mxu0 0.0
        %262 = vmatpush1.xpose.msra.mxu0 0.0
        %263 = vmatprep.subr.mxu0 0.0
        %264 = vmatpush1.xpose.msra.mxu0 0.0
        %265 = vmatprep.subr.mxu0 0.0
        %266 = vmatpush1.xpose.msra.mxu0 0.0
        %267 = vmatprep.subr.mxu0 0.0
        %268 = vmatpush1.xpose.msra.mxu0 0.0
        %269 = vmatprep.subr.mxu0 0.0
        %270 = vmatpush1.xpose.msra.mxu0 0.0
        %271 = vmatprep.subr.mxu0 0.0
        %272 = vmatpush1.xpose.msra.mxu0 0.0
        %273 = vmatprep.subr.mxu0 0.0
        %274 = vmatpush1.xpose.msra.mxu0 0.0
        %275 = vmatprep.subr.mxu0 0.0
        %276 = vmatpush1.xpose.msra.mxu0 0.0
        %277 = vmatprep.subr.mxu0 0.0
        %278 = vmatpush1.xpose.msra.mxu0 0.0
        %279 = vmatprep.mubr.f32.mxu0 0.0
        %280 = vmatmul.mubr.f32.gmra.mrb[0].mxu0 %v210
        %v281 = vpop.f32.mrb[0].mxu0
        %v282 = vadd.f32 %v206, %v281
        %v283 = vpop.f32.mrb[0].mxu0
        %284 = vdwg.mxu0
        %vm285 = vcmask 39936
        %v286 = vsel %vm285, %v282, -inf
        %287 = vmax.xlane.f32.xlu0 %v286
        %v288 = vpop.xlane.xlu0 %287
        %v289 = vsub.f32 %v282, %v288
        %v290 = vmul.f32 %v289, 1.442695
        %v291 = vpow.pop %v290
        %v292 = vsel %vm285, %v291, 0.0
        %293 = vadd.xlane.f32.xlu0 %v292
        %v294 = vpop.xlane.xlu0 %293
        %v295 = vrcp.pop %v294
        %v296 = vmul.f32 %v294, %v295
        %v297 = vsub.f32 2.0, %v296
        %v298 = vmul.f32 %v295, %v297
        %v299 = vmul.f32 %v291, %v298
        %300 = vst.msk [vmem:[%s198] sm:$0xff] %vm285, %v299
        %p301 = scmp.lt.s32.totalorder %s18, 2
        %s302 = scalar_select %p301, %s18, 2
        %s303 = smul.addr %s302, 8
        %s304 = scalar_lea.vmem %s3, %s303
        // Predicated region
        $region41: #{tpu_custom_call.1} parent=31 // pred_check
          %p305 = pneg %p104
        $region42: #{tpu_custom_call.1} parent=31 // pred_check_branch
          %307 = sbr.rel (%p305) target = $region44
        $region43: #{tpu_custom_call.1} parent=31 // pred_region
          _
        $region44: #{tpu_custom_call.1} parent=31 // pred_fallthru
          _
      $region32: #{tpu_custom_call.1} parent=5 // pred_fallthru
        _
      %p308 = scmp.le.s32.totalorder 2, %s13
      // Predicated region
      $region45: #{tpu_custom_call.1} parent=5 // pred_check
        %p309 = pneg %p308
      $region46: #{tpu_custom_call.1} parent=5 // pred_check_branch
        %311 = sbr.rel (%p309) target = $region48
      $region47: #{tpu_custom_call.1} parent=5 // pred_region
        %s312 = ssub.s32 %s13, 2
        // Predicated region
        $region49: #{tpu_custom_call.1} parent=47 // pred_check
          %p313 = pneg %p110
        $region50: #{tpu_custom_call.1} parent=47 // pred_check_branch
          %315 = sbr.rel (%p313) target = $region52
        $region51: #{tpu_custom_call.1} parent=47 // pred_region
          %p316 = scmp.lt.s32.totalorder %s19, 2
          %s317 = scalar_select %p316, %s19, 2
          %s318 = smul.addr %s317, 8
          %s319 = scalar_lea.vmem %s3, %s318
        $region52: #{tpu_custom_call.1} parent=47 // pred_fallthru
          _
      $region48: #{tpu_custom_call.1} parent=5 // pred_fallthru
        _
    $region6: #{tpu_custom_call.1} parent=1 // loop_footer
      %s17 = sadd.s32 1, %s13
    $region7: #{tpu_custom_call.1} parent=1 // loop_footer_branch
      %12 = sbr.rel target = $region3
    $region8: #{tpu_custom_call.1} parent=1 // loop_exit
      _
    %320 = vsyncpa [#allocation3], 1
    %s321 = scalar_lea.sflag [#allocation3], 1
    %322 = vsyncpa %s321, 1
    %323 = vsyncpa [#allocation5], 1

</llo_original>
